<compile_context>
chip_gen: v6e
topology: v6e:2x2x1
jax: 0.10.0
libtpu: 0.0.40
codegen_flags: <defaults>
</compile_context>

<pallas_src>
import functools

import jax
import jax.numpy as jnp
from jax import lax
from jax.experimental import pallas as pl
from jax.experimental.pallas import tpu as pltpu

_LANES = 128
_MAX_ROW_TILE = 4096                   # (4096, 128) f32 block = 2 MiB per grid step


def _round_up(a, b):
    return ((a + b - 1) // b) * b


def _cdiv(a, b):
    return -(-a // b)


@functools.lru_cache(maxsize=None)
def _vmem_capacity_bytes():
    try:
        return int(pltpu.get_tpu_info().vmem_capacity_bytes)
    except Exception:
        return 64 * 1024 * 1024        # conservative fallback (v7x physical VMEM)


def _sqrt_scalar(v):
    """sqrt of a scalar via a (1,1) vector op (EUP); avoids scalar-sqrt lowering."""
    return jnp.sum(jnp.sqrt(jnp.broadcast_to(v, (1, 1))))


def _threshold_scalar(s_sum, s_sumsq, s_max, k, c, n, mini, maxi):
    """Threshold from shifted stats (s_* are sum/sumsq/max of (x - k))."""
    inv_n = 1.0 / n
    inv_nm1 = 1.0 / max(n - 1.0, 1.0)
    mean_sh = s_sum * inv_n                      # mean of (x - k)
    var = jnp.maximum((s_sumsq - s_sum * mean_sh) * inv_nm1, 0.0)
    std = _sqrt_scalar(var)
    # clip(c*(max-m)/std, mini, maxi)*std == clip(c*(max-m), mini*std, maxi*std)
    dev = jnp.clip(c * (s_max - mean_sh), mini * std, maxi * std)
    return jnp.maximum(k + mean_sh + dev, 0.0)   # relu


# ----------------------------------------------------------------------------
# Pass 1 (two-pass path): global stats -> single SMEM threshold scalar
# ----------------------------------------------------------------------------
def _stats_kernel(c_ref, k_ref, x_ref, th_ref, acc_sum, acc_sumsq, acc_max,
                  *, tail_valid, block_elems, n, mini, maxi):
    i = pl.program_id(0)
    nsteps = pl.num_programs(0)

    @pl.when(i == 0)
    def _init():
        acc_sum[...] = jnp.zeros_like(acc_sum)
        acc_sumsq[...] = jnp.zeros_like(acc_sumsq)
        acc_max[...] = jnp.full_like(acc_max, -jnp.inf)

    # Native-dtype load, in-register upcast; shift by k (first element) to
    # reduce cancellation in the single-pass sum/sumsq variance.
    xs = x_ref[...].astype(jnp.float32) - k_ref[0]

    def accumulate(vals_sum, vals_max):
        # In-register (VALU-only) reduction of the block down to one vreg,
        # then a single (8,128) accumulator update per stat.
        r = vals_sum.reshape(-1, 8, _LANES)
        acc_sum[...] += jnp.sum(r, axis=0)
        acc_sumsq[...] += jnp.sum(r * r, axis=0)
        rm = vals_max.reshape(-1, 8, _LANES)
        acc_max[...] = jnp.maximum(acc_max[...], jnp.max(rm, axis=0))

    if tail_valid < block_elems:                  # static: ragged last block
        @pl.when(i < nsteps - 1)
        def _full_blocks():
            accumulate(xs, xs)

        @pl.when(i == nsteps - 1)
        def _tail_block():
            _, lanes = xs.shape
            row_ids = lax.broadcasted_iota(jnp.int32, xs.shape, 0)
            if tail_valid % lanes == 0:           # row-ragged only (1 iota)
                valid = row_ids < (tail_valid // lanes)
            else:                                 # lane-ragged too (pad path)
                lane_ids = lax.broadcasted_iota(jnp.int32, xs.shape, 1)
                valid = row_ids * lanes + lane_ids < tail_valid
            accumulate(jnp.where(valid, xs, 0.0), jnp.where(valid, xs, -jnp.inf))
    else:
        accumulate(xs, xs)

    # Cross-lane/sublane reduce + threshold exactly once, on the last step.
    @pl.when(i == nsteps - 1)
    def _finalize():
        s_sum = jnp.sum(acc_sum[...])
        s_sumsq = jnp.sum(acc_sumsq[...])
        s_max = jnp.max(acc_max[...])
        th_ref[0] = _threshold_scalar(s_sum, s_sumsq, s_max, k_ref[0], c_ref[0],
                                      n, mini, maxi)


# ----------------------------------------------------------------------------
# Pass 2 (two-pass path): elementwise indicator (PSD > th), native output dtype
# ----------------------------------------------------------------------------
def _mask_kernel(th_ref, x_ref, o_ref):
    x = x_ref[...].astype(jnp.float32)
    o_ref[...] = (x > th_ref[0]).astype(o_ref.dtype)


# ----------------------------------------------------------------------------
# Fused single-call path for small inputs: 1 HBM read + 1 HBM write
# ----------------------------------------------------------------------------
def _fused_kernel(c_ref, x_ref, o_ref, *, total, mini, maxi, has_pad):
    x = x_ref[...].astype(jnp.float32)
    n = float(total)
    if has_pad:
        _, lanes = x.shape
        row_ids = lax.broadcasted_iota(jnp.int32, x.shape, 0)
        lane_ids = lax.broadcasted_iota(jnp.int32, x.shape, 1)
        valid = row_ids * lanes + lane_ids < total
        x_for_max = jnp.where(valid, x, -jnp.inf)
    else:
        valid = None
        x_for_max = x

    m = jnp.sum(x) * (1.0 / n)                    # in-array zero pad is sum-neutral
    centered = x - m
    if valid is not None:
        centered = jnp.where(valid, centered, 0.0)
    var = jnp.sum(centered * centered) * (1.0 / max(n - 1.0, 1.0))
    std = _sqrt_scalar(var)
    s_max = jnp.max(x_for_max)
    dev = jnp.clip(c_ref[0] * (s_max - m), mini * std, maxi * std)
    th = jnp.maximum(m + dev, 0.0)
    o_ref[...] = (x > th).astype(o_ref.dtype)


# ----------------------------------------------------------------------------
# Wrapper
# ----------------------------------------------------------------------------
def fft_th_forward(psd, c, mini=-5.0, maxi=5.0,
                   max_fused_bytes=None, max_row_tile=_MAX_ROW_TILE):
    """Pallas implementation of FFTTh.forward (func = identity)."""
    orig_shape = psd.shape
    orig_dtype = jnp.dtype(psd.dtype)

    # Compute/storage dtype: keep 16/32-bit floats native; everything else -> f32.
    if orig_dtype not in (jnp.dtype(jnp.float32), jnp.dtype(jnp.bfloat16),
                          jnp.dtype(jnp.float16)):
        psd = psd.astype(jnp.float32)
    work_dtype = jnp.dtype(psd.dtype)
    itemsize = work_dtype.itemsize
    sub = {4: 8, 2: 16, 1: 32}.get(itemsize, 8)   # sublane multiple for dtype

    total = int(psd.size)
    if total == 0:
        return jnp.zeros(orig_shape, orig_dtype)

    vmem_cap = _vmem_capacity_bytes()
    vmem_limit = min(int(vmem_cap * 3 // 4), 96 * 1024 * 1024)
    if max_fused_bytes is None:
        # Generation-aware: ~8 MiB on v5e/v6e (128 MiB VMEM), ~4 MiB on v7x (64 MiB).
        max_fused_bytes = min(vmem_cap // 16, 8 * 1024 * 1024)

    aligned = (total % _LANES) == 0
    if aligned:
        # Hot path: lane-dense 2D view, no padding copy, no output slice.
        rows = total // _LANES
        x2 = psd.reshape(rows, _LANES)
        padded = False
    else:
        # Fallback for awkward totals: minimal zero pad (one copy) in native dtype.
        # TODO(synk): tile the original (..., last_dim) layout directly to avoid
        #             this copy for large non-128-aligned inputs.
        rows = _round_up(_cdiv(total, _LANES), sub)
        flat = psd.reshape(-1)
        pad = rows * _LANES - total
        x2 = jnp.concatenate([flat, jnp.zeros((pad,), work_dtype)]).reshape(rows, _LANES)
        padded = True

    c_arr = jnp.asarray(c, jnp.float32).reshape(-1)[:1]   # self.func(self.c), func=id

    fused = total * itemsize <= max_fused_bytes
    if fused:
        out2 = pl.pallas_call(
            functools.partial(_fused_kernel, total=total, mini=float(mini),
                              maxi=float(maxi), has_pad=padded),
            grid=(1,),
            in_specs=[
                pl.BlockSpec(memory_space=pltpu.SMEM),
                pl.BlockSpec((rows, _LANES), lambda i: (0, 0)),
            ],
            out_specs=pl.BlockSpec((rows, _LANES), lambda i: (0, 0)),
            out_shape=jax.ShapeDtypeStruct((rows, _LANES), work_dtype),
            compiler_params=pltpu.CompilerParams(
                dimension_semantics=("arbitrary",),
                vmem_limit_bytes=vmem_limit),
            cost_estimate=pl.CostEstimate(
                flops=6 * total, transcendentals=1,
                bytes_accessed=2 * total * itemsize),
        )(c_arr, x2)
    else:
        row_tile = min(max_row_tile, _round_up(rows, sub))
        nblocks = _cdiv(rows, row_tile)
        block_elems = row_tile * _LANES
        tail_valid = total - (nblocks - 1) * block_elems   # static, block-relative

        # Shift constant (first element) for numerically safer sum/sumsq variance.
        k_arr = lax.slice(x2, (0, 0), (1, 1)).reshape(1).astype(jnp.float32)

        # Pass 1: stream once, finalize threshold in-kernel (single SMEM scalar out).
        th = pl.pallas_call(
            functools.partial(_stats_kernel, tail_valid=tail_valid,
                              block_elems=block_elems, n=float(total),
                              mini=float(mini), maxi=float(maxi)),
            grid=(nblocks,),
            in_specs=[
                pl.BlockSpec(memory_space=pltpu.SMEM),
                pl.BlockSpec(memory_space=pltpu.SMEM),
                pl.BlockSpec((row_tile, _LANES), lambda i: (i, 0)),
            ],
            out_specs=pl.BlockSpec(memory_space=pltpu.SMEM),
            out_shape=jax.ShapeDtypeStruct((1,), jnp.float32),
            scratch_shapes=[pltpu.VMEM((8, _LANES), jnp.float32)] * 3,
            compiler_params=pltpu.CompilerParams(
                dimension_semantics=("arbitrary",),
                vmem_limit_bytes=vmem_limit),
            cost_estimate=pl.CostEstimate(
                flops=5 * total, transcendentals=1,
                bytes_accessed=total * itemsize),
        )(c_arr, k_arr, x2)

        # Pass 2: stream again, write the indicator in the original dtype.
        out2 = pl.pallas_call(
            _mask_kernel,
            grid=(nblocks,),
            in_specs=[
                pl.BlockSpec(memory_space=pltpu.SMEM),
                pl.BlockSpec((row_tile, _LANES), lambda i: (i, 0)),
            ],
            out_specs=pl.BlockSpec((row_tile, _LANES), lambda i: (i, 0)),
            out_shape=jax.ShapeDtypeStruct((rows, _LANES), work_dtype),
            compiler_params=pltpu.CompilerParams(
                dimension_semantics=("parallel",),
                vmem_limit_bytes=vmem_limit),
            cost_estimate=pl.CostEstimate(
                flops=2 * total, transcendentals=0,
                bytes_accessed=2 * total * itemsize),
        )(th, x2)

    if padded:
        out = out2.reshape(-1)[:total].reshape(orig_shape)
    else:
        out = out2.reshape(orig_shape)
    return out.astype(orig_dtype) if out.dtype != orig_dtype else out


# ----------------------------------------------------------------------------
# Reference + robust check (tolerant only to exact-threshold boundary ties)
# ----------------------------------------------------------------------------
def _reference(psd, c, mini=-5.0, maxi=5.0):
    psd = psd.astype(jnp.float32)
    m = jnp.mean(psd)
    s = jnp.std(psd, ddof=1)
    norm = (psd - m) / s
    th = jax.nn.relu(m + jnp.clip(c[0] * jnp.max(norm), mini, maxi) * s)
    ind = jax.nn.relu(psd - th)
    d = jnp.where(ind > 0, ind, 1.0)
    return ind / d, th


def _assert_matches(out, psd, c, mini=-5.0, maxi=5.0, name=""):
    ref, th = _reference(psd, c, mini, maxi)
    psd32 = psd.astype(jnp.float32)
    near = jnp.abs(psd32 - th) <= 1e-4 * jnp.maximum(jnp.abs(th), 1.0)
    ok = jnp.all((out.astype(jnp.float32) == ref) | near)
    assert bool(ok), f"{name}: mismatch vs reference away from the threshold"


if __name__ == "__main__":
    key = jax.random.PRNGKey(0)
    k1, k2, k3 = jax.random.split(key, 3)

    # Parameter c (nn.Parameter of shape (1,)).
    c = jnp.array([0.9], dtype=jnp.float32)

    # 1) Small PSD-like input (NCHW), f32: fused single-kernel path (no copies).
    psd1 = jax.random.uniform(k1, (2, 4, 16, 16), dtype=jnp.float32) ** 2
    out1 = jax.block_until_ready(fft_th_forward(psd1, c))
    assert out1.shape == psd1.shape and out1.dtype == psd1.dtype
    _assert_matches(out1, psd1, c, name="fused f32")

    # 2) Odd-sized input (ragged, needs pad fallback), forced two-pass path.
    psd2 = jax.random.uniform(k2, (2, 3, 15, 17), dtype=jnp.float32) ** 2
    out2 = jax.block_until_ready(fft_th_forward(psd2, c, max_fused_bytes=0))
    assert out2.shape == psd2.shape and out2.dtype == psd2.dtype
    _assert_matches(out2, psd2, c, name="two-pass ragged f32")

    # 3) bf16 input, forced two-pass: native-dtype streaming + native-dtype output.
    psd3 = (jax.random.uniform(k3, (2, 4, 16, 16), dtype=jnp.float32) ** 2
            ).astype(jnp.bfloat16)
    out3 = jax.block_until_ready(fft_th_forward(psd3, c, max_fused_bytes=0))
    assert out3.shape == psd3.shape and out3.dtype == psd3.dtype
    _assert_matches(out3, psd3, c, name="two-pass bf16")

    print("KERNEL_OK")
</pallas_src>

<mosaic_0001>
module attributes {stable_mosaic.version = 11 : i64} {
  func.func @_fused_kernel(%arg0: i32, %arg1: memref<1xf32, #tpu.memory_space<smem>>, %arg2: memref<16x128xf32, #tpu.memory_space<vmem>>, %arg3: memref<16x128xf32, #tpu.memory_space<vmem>>) attributes {dimension_semantics = [#tpu.dimension_semantics<arbitrary>], iteration_bounds = array<i64: 1>, scalar_prefetch = 0 : i64, scratch_operands = 0 : i64, tpu.core_type = #tpu.core_type<tc>, window_params = [{transform_indices = @transform_0, window_bounds = array<i64: 1>}, {pipeline_mode = #tpu.pipeline_mode<synchronous>, transform_indices = @transform_1, window_bounds = array<i64: 16, 128>}, {pipeline_mode = #tpu.pipeline_mode<synchronous>, transform_indices = @transform_2, window_bounds = array<i64: 16, 128>}]} {
    %c0 = arith.constant 0 : index
    %c0_0 = arith.constant 0 : index
    %0 = vector.load %arg2[%c0, %c0_0] : memref<16x128xf32, #tpu.memory_space<vmem>>, vector<16x128xf32>
    %1 = vector.shape_cast %0 : vector<16x128xf32> to vector<1x16x128xf32>
    %cst = arith.constant dense<0.000000e+00> : vector<1xf32>
    %2 = vector.multi_reduction <add>, %1, %cst [1, 2] : vector<1x16x128xf32> to vector<1xf32>
    %3 = vector.shape_cast %2 : vector<1xf32> to vector<1x1x1xf32>
    %4 = vector.extract %3[0, 0, 0] : f32 from vector<1x1x1xf32>
    %cst_1 = arith.constant 4.8828125E-4 : f32
    %5 = arith.mulf %4, %cst_1 : f32
    %6 = vector.broadcast %5 : f32 to vector<16x128xf32>
    %7 = arith.subf %0, %6 : vector<16x128xf32>
    %8 = arith.mulf %7, %7 : vector<16x128xf32>
    %9 = vector.shape_cast %8 : vector<16x128xf32> to vector<1x16x128xf32>
    %cst_2 = arith.constant dense<0.000000e+00> : vector<1xf32>
    %10 = vector.multi_reduction <add>, %9, %cst_2 [1, 2] : vector<1x16x128xf32> to vector<1xf32>
    %11 = vector.shape_cast %10 : vector<1xf32> to vector<1x1x1xf32>
    %12 = vector.extract %11[0, 0, 0] : f32 from vector<1x1x1xf32>
    %cst_3 = arith.constant 4.88519785E-4 : f32
    %13 = arith.mulf %12, %cst_3 : f32
    %14 = vector.broadcast %13 : f32 to vector<1x1xf32>
    %15 = math.sqrt %14 : vector<1x1xf32>
    %16 = vector.shape_cast %15 : vector<1x1xf32> to vector<1x1x1xf32>
    %cst_4 = arith.constant dense<0.000000e+00> : vector<1xf32>
    %17 = vector.multi_reduction <add>, %16, %cst_4 [1, 2] : vector<1x1x1xf32> to vector<1xf32>
    %18 = vector.shape_cast %17 : vector<1xf32> to vector<1x1x1xf32>
    %19 = vector.extract %18[0, 0, 0] : f32 from vector<1x1x1xf32>
    %20 = vector.shape_cast %0 : vector<16x128xf32> to vector<1x16x128xf32>
    %cst_5 = arith.constant dense<0xFF800000> : vector<1xf32>
    %21 = vector.multi_reduction <maximumf>, %20, %cst_5 [1, 2] : vector<1x16x128xf32> to vector<1xf32>
    %22 = vector.shape_cast %21 : vector<1xf32> to vector<1x1x1xf32>
    %23 = vector.extract %22[0, 0, 0] : f32 from vector<1x1x1xf32>
    %c0_6 = arith.constant 0 : index
    %24 = memref.load %arg1[%c0_6] : memref<1xf32, #tpu.memory_space<smem>>
    %25 = arith.subf %23, %5 : f32
    %26 = arith.mulf %24, %25 : f32
    %cst_7 = arith.constant -5.000000e+00 : f32
    %27 = arith.mulf %cst_7, %19 : f32
    %cst_8 = arith.constant 5.000000e+00 : f32
    %28 = arith.mulf %cst_8, %19 : f32
    %29 = arith.maximumf %27, %26 : f32
    %30 = arith.minimumf %28, %29 : f32
    %31 = arith.addf %5, %30 : f32
    %cst_9 = arith.constant 0.000000e+00 : f32
    %32 = arith.maximumf %31, %cst_9 : f32
    %33 = vector.broadcast %32 : f32 to vector<16x128xf32>
    %34 = arith.cmpf ogt, %0, %33 : vector<16x128xf32>
    %35 = arith.extui %34 : vector<16x128xi1> to vector<16x128xi32>
    %36 = arith.sitofp %35 : vector<16x128xi32> to vector<16x128xf32>
    %c0_10 = arith.constant 0 : index
    %c0_11 = arith.constant 0 : index
    %37 = vector.load %arg3[%c0_10, %c0_11] : memref<16x128xf32, #tpu.memory_space<vmem>>, vector<16x128xf32>
    tpu.vector_store %arg3[%c0_10, %c0_11], %36 {strides = array<i32>} : memref<16x128xf32, #tpu.memory_space<vmem>>, vector<16x128xf32>,
    return
  }
  func.func @transform_0(%arg0: i32) -> i32 {
    %c0_i32 = arith.constant 0 : i32
    %c0_i32_0 = arith.constant 0 : i32
    return %c0_i32 : i32
  }
  func.func @transform_1(%arg0: i32) -> (i32, i32) {
    %c0_i32 = arith.constant 0 : i32
    %c0_i32_0 = arith.constant 0 : i32
    %c0_i32_1 = arith.constant 0 : i32
    return %c0_i32, %c0_i32_0 : i32, i32
  }
  func.func @transform_2(%arg0: i32) -> (i32, i32) {
    %c0_i32 = arith.constant 0 : i32
    %c0_i32_0 = arith.constant 0 : i32
    %c0_i32_1 = arith.constant 0 : i32
    return %c0_i32, %c0_i32_0 : i32, i32
  }
}

</mosaic_0001>

<llo_original>
// kernel: tpu_custom_call.1
$region0: #{tpu_custom_call.1}
  #allocation0 [shape = 'u32[]', space=smem, size = 0x4, offset = 0x4, fixed_abs, tag = 'smem constant byte address 0x4 - core index']
  #allocation1 [shape = 'u32[144,128]{1,0:T(1,128)}', space=vmem, size = 0x12000, scoped, tag = 'internal scratch']
  #allocation2 [shape = 'f32[1]{0:T(128)S(6)}', space=smem, size = 0x200, scoped, tag = 'scoped memory for tpu_custom_call.1']
  %s0 = inlined_call_operand.<no memory space> [shape: f32[1], index: 0, kind: input, shape index: {}]
  %s1 = inlined_call_operand.hbm [shape: f32[16,128], index: 1, kind: input, shape index: {}]
  %s2 = inlined_call_operand.hbm [shape: f32[16,128], index: 2, kind: output, shape index: {}]
  %s3 = sld [smem:[#allocation0]]
  $region22: #{tpu_custom_call.1} parent=0
    _
  %s5 = ssub.s32 1, %s3
  %s6 = scalar_select 0, %s5, %s3
  %7 = sst [smem:[#allocation2]] %s0
  $region1: #{tpu_custom_call.1} parent=0
    #allocation3 [shape = 'u8[8192]{0}', space=vmem, size = 0x2000, scoped, tag = 'input window, operand 1, single buffered']
    #allocation4 [shape = 's32[1]{0}', space=sflag, size = 0x4, scoped, tag = 'scoped memory for tpu_custom_call.1']
    #allocation5 [shape = 's32[1]{0}', space=sflag, size = 0x4, scoped, tag = 'scoped memory for tpu_custom_call.1']
    #allocation6 [shape = 'u8[8192]{0}', space=vmem, size = 0x2000, scoped, tag = 'output window, operand 0, single buffered']
    %8 = vsyncpa [#allocation4], 0
    %9 = vsyncpa [#allocation5], 0
    // Predicated region
    $region2: #{tpu_custom_call.1} parent=1 // pred_check
      _
    $region3: #{tpu_custom_call.1} parent=1 // pred_check_branch
      %11 = sbr.rel (0) target = $region5
    $region4: #{tpu_custom_call.1} parent=1 // pred_region
      _
    $region5: #{tpu_custom_call.1} parent=1 // pred_fallthru
      _
    // Predicated region
    $region6: #{tpu_custom_call.1} parent=1 // pred_check
      _
    $region7: #{tpu_custom_call.1} parent=1 // pred_check_branch
      %13 = sbr.rel (0) target = $region9
    $region8: #{tpu_custom_call.1} parent=1 // pred_region
      %s15 = ssub.s32 256, 256
      %16 = vsyncadd [#allocation4], %s15
      %s17 = sshll.u32 [#allocation3], 4
      %s18 = int_to_ptr.vmem [resolvable:$true] %s17
      %23 = dma.hbm_to_vmem [thread:$0]  %s1, 256, %s18, [#allocation4], 128, 128, 8
    $region9: #{tpu_custom_call.1} parent=1 // pred_fallthru
      _
    // Predicated region
    $region10: #{tpu_custom_call.1} parent=1 // pred_check
      _
    $region11: #{tpu_custom_call.1} parent=1 // pred_check_branch
      %25 = sbr.rel (0) target = $region13
    $region12: #{tpu_custom_call.1} parent=1 // pred_region
      %26 = dma.done [#allocation4], 256
    $region13: #{tpu_custom_call.1} parent=1 // pred_fallthru
      _
    %v27 = vld [vmem:[#allocation3] sm:$0xff]
    %v28 = vld [vmem:[#allocation3 + $0x8] sm:$0xff]
    %v29 = vadd.f32 %v27, %v28
    %30 = vadd.xlane.f32.xlu0 %v29
    %v31 = vpop.xlane.xlu0 %30
    %v32 = vrot.slane %v31, 4
    %v33 = vadd.f32 %v31, %v32
    %v34 = vrot.slane %v33, 2
    %v35 = vadd.f32 %v33, %v34
    %v36 = vrot.slane %v35, 1
    %v37 = vadd.f32 %v35, %v36
    %s38 = vtos %v37
    %s39 = smul.f32 %s38, 0.00048828125
    %v40 = vstv %s39
    %v41 = vsub.f32 %v27, %v40
    %v42 = vsub.f32 %v28, %v40
    %v43 = vmul.f32 %v41, %v41
    %v44 = vmul.f32 %v42, %v42
    %v45 = vadd.f32 %v43, %v44
    %46 = vadd.xlane.f32.xlu0 %v45
    %v47 = vpop.xlane.xlu0 %46
    %v48 = vrot.slane %v47, 4
    %v49 = vadd.f32 %v47, %v48
    %v50 = vrot.slane %v49, 2
    %v51 = vadd.f32 %v49, %v50
    %v52 = vrot.slane %v51, 1
    %v53 = vadd.f32 %v51, %v52
    %s54 = vtos %v53
    %s55 = smul.f32 %s54, 0.0004885198
    %v56 = vstv %s55
    %v57 = vrsqrt.pop %v56
    %v58 = vmul.f32 %v56, %v57
    %vm59 = vcmp.eq.f32.partialorder %v56, inf
    %v60 = vsel %vm59, %v56, %v58
    %vm61 = vcmp.eq.f32.partialorder %v56, 0.0
    %v62 = vand.u32 %v56, 2147483648
    %v63 = vsel %vm61, %v62, %v60
    %v64 = vadd.f32 %v63, 0.0
    %s65 = vtos %v64
    %v66 = vmax.f32 %v27, %v28
    %67 = vmax.xlane.f32.xlu0 %v66
    %v68 = vpop.xlane.xlu0 %67
    %v69 = vrot.slane %v68, 4
    %v70 = vmax.f32 %v68, %v69
    %v71 = vrot.slane %v70, 2
    %v72 = vmax.f32 %v70, %v71
    %v73 = vrot.slane %v72, 1
    %v74 = vmax.f32 %v72, %v73
    %s75 = vtos %v74
    %s76 = sld [smem:[#allocation2]]
    %s77 = ssub.f32 %s75, %s39
    %s78 = smul.f32 %s76, %s77
    %s79 = smul.f32 %s65, -5.0
    %s80 = smul.f32 %s65, 5.0
    %s81 = smax.f32 %s79, %s78
    %s82 = smin.f32 %s80, %s81
    %s83 = sadd.f32 %s39, %s82
    %s84 = smax.f32 %s83, 0.0
    %v85 = vstv %s84
    %vm86 = vcmp.gt.f32.partialorder %v27, %v85
    %vm87 = vcmp.gt.f32.partialorder %v28, %v85
    %v88 = vsel %vm86, 1, 0
    %v89 = vsel %vm87, 1, 0
    %v90 = vcvt.s32.f32 %v88
    %v91 = vcvt.s32.f32 %v89
    %92 = vst [vmem:[#allocation6] sm:$0xff] %v90
    %93 = vst [vmem:[#allocation6 + $0x8] sm:$0xff] %v91
    // Predicated region
    $region14: #{tpu_custom_call.1} parent=1 // pred_check
      _
    $region15: #{tpu_custom_call.1} parent=1 // pred_check_branch
      %95 = sbr.rel (0) target = $region17
    $region16: #{tpu_custom_call.1} parent=1 // pred_region
      %s97 = ssub.s32 256, 256
      %98 = vsyncadd [#allocation5], %s97
      %s99 = sshll.u32 [#allocation6], 4
      %s100 = int_to_ptr.vmem [resolvable:$true] %s99
      %105 = dma.vmem_to_hbm [thread:$0]  %s100, 256, %s2, [#allocation5], 128, 128, 8
    $region17: #{tpu_custom_call.1} parent=1 // pred_fallthru
      _
    // Predicated region
    $region18: #{tpu_custom_call.1} parent=1 // pred_check
      _
    $region19: #{tpu_custom_call.1} parent=1 // pred_check_branch
      %107 = sbr.rel (0) target = $region21
    $region20: #{tpu_custom_call.1} parent=1 // pred_region
      %108 = dma.done [#allocation5], 256
    $region21: #{tpu_custom_call.1} parent=1 // pred_fallthru
      _
    %109 = vsyncpa [#allocation4], 1
    %110 = vsyncpa [#allocation5], 1

</llo_original>
